<compile_context>
chip_gen: v5e
topology: v5e:2x2
jax: 0.10.0
libtpu: 0.0.40
codegen_flags: <defaults>
</compile_context>

<pallas_src>
import jax
import jax.numpy as jnp
from jax.experimental import pallas as pl
from jax.experimental.pallas import tpu as pltpu


def dqn_kernel(x_ref, w1_ref, b1_ref, w2_ref, b2_ref, o_ref):
    # x.float() semantics from the PyTorch module (no-op if already f32).
    x = x_ref[...]
    if x.dtype != jnp.float32:
        x = x.astype(jnp.float32)

    k_in = x_ref.shape[1]

    # Linear(input_size, 128) + ReLU on the VPU.
    # K is tiny (4 for CartPole), so unrolled broadcast multiply-adds beat a
    # K=4 MXU matmul (which wastes the systolic array and pays push/pop latency).
    h = x[:, 0:1] * w1_ref[0:1, :] + b1_ref[...]            # [TB, H]
    for k in range(1, k_in):                                 # unrolled at trace time
        h = h + x[:, k:k + 1] * w1_ref[k:k + 1, :]
    h = jnp.maximum(h, 0.0)                                  # fused ReLU

    # Linear(128, n_actions) on the MXU: bf16 operands, f32 accumulation.
    y = jnp.dot(h.astype(w2_ref.dtype), w2_ref[...],
                preferred_element_type=jnp.float32)
    o_ref[...] = y + b2_ref[...]                             # [TB, n_actions]


def prepare_dqn_params(w1, b1, w2, b2):
    """One-time parameter prep (hoisted out of the per-call forward path).

    w1: [input_size, H], b1: [H] or [1, H], w2: [H, n_actions], b2: [n_actions] or [1, n_actions].
    """
    H = w1.shape[1]
    n_actions = w2.shape[1]
    w1f = w1.astype(jnp.float32)
    b1r = jnp.reshape(b1, (1, H)).astype(jnp.float32)
    w2b = w2.astype(jnp.bfloat16)                 # MXU-native operand dtype
    b2r = jnp.reshape(b2, (1, n_actions)).astype(jnp.float32)
    return w1f, b1r, w2b, b2r


def _round_up(n, m):
    return ((n + m - 1) // m) * m


def dqn_forward(x, params, *, max_batch_tile=4096, grid_min_batch=256):
    """x: [B, input_size]; params from prepare_dqn_params().

    Returns Q-values [B, n_actions] (float32).
    """
    w1f, b1r, w2b, b2r = params
    B, K = x.shape
    H = w1f.shape[1]
    n_actions = w2b.shape[1]

    if B >= grid_min_batch:
        # Replay-buffer path: 1-D grid over the batch. Activation tiles stream
        # (double-buffered) while the weights stay VMEM-resident (index_map ->
        # (0, 0)). At least two tiles so v7x can shard across both TensorCores.
        num_tiles = max(2, pl.cdiv(B, max_batch_tile))
        TB = _round_up(pl.cdiv(B, num_tiles), 8)
        grid = (pl.cdiv(B, TB),)
        return pl.pallas_call(
            dqn_kernel,
            out_shape=jax.ShapeDtypeStruct((B, n_actions), jnp.float32),
            grid=grid,
            in_specs=[
                pl.BlockSpec((TB, K), lambda i: (i, 0)),            # x tile
                pl.BlockSpec((K, H), lambda i: (0, 0)),             # w1 (resident)
                pl.BlockSpec((1, H), lambda i: (0, 0)),             # b1 (resident)
                pl.BlockSpec((H, n_actions), lambda i: (0, 0)),     # w2 (resident, bf16)
                pl.BlockSpec((1, n_actions), lambda i: (0, 0)),     # b2 (resident)
            ],
            out_specs=pl.BlockSpec((TB, n_actions), lambda i: (i, 0)),
            compiler_params=pltpu.CompilerParams(
                dimension_semantics=("parallel",)),                 # 2 TCs on v7x
        )(x, w1f, b1r, w2b, b2r)

    # Small-batch path (e.g. single-env CartPole inference): one grid-less call,
    # everything as full-array VMEM blocks.
    vmem = pl.BlockSpec(memory_space=pltpu.MemorySpace.VMEM)
    return pl.pallas_call(
        dqn_kernel,
        out_shape=jax.ShapeDtypeStruct((B, n_actions), jnp.float32),
        in_specs=[vmem, vmem, vmem, vmem, vmem],
        out_specs=vmem,
    )(x, w1f, b1r, w2b, b2r)


def init_dqn_params(key, input_size, n_actions, hidden=128):
    """Deterministic synthetic parameters (PyTorch-Linear-like uniform init)."""
    k1, k2, k3, k4 = jax.random.split(key, 4)
    bound1 = 1.0 / jnp.sqrt(input_size)
    bound2 = 1.0 / jnp.sqrt(hidden)
    # Stored as [in, out] (transposed relative to torch's [out, in]).
    w1 = jax.random.uniform(k1, (input_size, hidden), jnp.float32, -bound1, bound1)
    b1 = jax.random.uniform(k2, (1, hidden), jnp.float32, -bound1, bound1)
    w2 = jax.random.uniform(k3, (hidden, n_actions), jnp.float32, -bound2, bound2)
    b2 = jax.random.uniform(k4, (1, n_actions), jnp.float32, -bound2, bound2)
    return w1, b1, w2, b2


if __name__ == "__main__":
    # CartPole: observation size 4, 2 actions.
    input_size, n_actions = 4, 2

    key = jax.random.PRNGKey(0)
    kx, kx2, kp = jax.random.split(key, 3)
    w1, b1, w2, b2 = init_dqn_params(kp, input_size, n_actions)
    params = prepare_dqn_params(w1, b1, w2, b2)   # one-time prep (f32 / bf16 / reshapes)

    def ref_fn(xx):
        return jnp.maximum(xx @ w1 + b1, 0.0) @ w2 + b2

    # bf16 MXU operands (f32 accumulation) => loosened tolerance vs the f32 reference.
    TOL = dict(atol=1e-2, rtol=1e-2)

    # 1) Small-batch path (single pallas_call, full VMEM blocks).
    batch = 8
    x = jax.random.normal(kx, (batch, input_size), dtype=jnp.float32)
    out = jax.block_until_ready(dqn_forward(x, params))
    assert out.shape == (batch, n_actions)
    assert jnp.allclose(out, ref_fn(x), **TOL)

    # 2) Replay-buffer path (batch grid, resident weights, non-multiple batch
    #    to exercise the uneven tail-block handling and the 2-tile split).
    batch_big = 1030
    xb = jax.random.normal(kx2, (batch_big, input_size), dtype=jnp.float32)
    out_big = jax.block_until_ready(dqn_forward(xb, params))
    assert out_big.shape == (batch_big, n_actions)
    assert jnp.allclose(out_big, ref_fn(xb), **TOL)

    print("KERNEL_OK")
</pallas_src>

<mosaic_0001>
module attributes {stable_mosaic.version = 11 : i64} {
  func.func @dqn_kernel(%arg0: memref<8x4xf32, #tpu.memory_space<vmem>>, %arg1: memref<4x128xf32, #tpu.memory_space<vmem>>, %arg2: memref<1x128xf32, #tpu.memory_space<vmem>>, %arg3: memref<128x2xbf16, #tpu.memory_space<vmem>>, %arg4: memref<1x2xf32, #tpu.memory_space<vmem>>, %arg5: memref<8x2xf32, #tpu.memory_space<vmem>>) attributes {dimension_semantics = [], scalar_prefetch = 0 : i64, scratch_operands = 0 : i64, tpu.core_type = #tpu.core_type<tc>} {
    %c0 = arith.constant 0 : index
    %c0_0 = arith.constant 0 : index
    %0 = vector.load %arg0[%c0, %c0_0] : memref<8x4xf32, #tpu.memory_space<vmem>>, vector<8x4xf32>
    %1 = vector.extract_strided_slice %0 {offsets = [0, 0], sizes = [8, 1], strides = [1, 1]} : vector<8x4xf32> to vector<8x1xf32>
    %c0_1 = arith.constant 0 : index
    %c0_2 = arith.constant 0 : index
    %2 = vector.load %arg1[%c0_1, %c0_2] : memref<4x128xf32, #tpu.memory_space<vmem>>, vector<1x128xf32>
    %3 = vector.broadcast %1 : vector<8x1xf32> to vector<8x128xf32>
    %4 = vector.broadcast %2 : vector<1x128xf32> to vector<8x128xf32>
    %5 = arith.mulf %3, %4 : vector<8x128xf32>
    %c0_3 = arith.constant 0 : index
    %c0_4 = arith.constant 0 : index
    %6 = vector.load %arg2[%c0_3, %c0_4] : memref<1x128xf32, #tpu.memory_space<vmem>>, vector<1x128xf32>
    %7 = vector.broadcast %6 : vector<1x128xf32> to vector<8x128xf32>
    %8 = arith.addf %5, %7 : vector<8x128xf32>
    %9 = vector.extract_strided_slice %0 {offsets = [0, 1], sizes = [8, 1], strides = [1, 1]} : vector<8x4xf32> to vector<8x1xf32>
    %c1 = arith.constant 1 : index
    %c0_5 = arith.constant 0 : index
    %10 = vector.load %arg1[%c1, %c0_5] : memref<4x128xf32, #tpu.memory_space<vmem>>, vector<1x128xf32>
    %11 = vector.broadcast %9 : vector<8x1xf32> to vector<8x128xf32>
    %12 = vector.broadcast %10 : vector<1x128xf32> to vector<8x128xf32>
    %13 = arith.mulf %11, %12 : vector<8x128xf32>
    %14 = arith.addf %8, %13 : vector<8x128xf32>
    %15 = vector.extract_strided_slice %0 {offsets = [0, 2], sizes = [8, 1], strides = [1, 1]} : vector<8x4xf32> to vector<8x1xf32>
    %c2 = arith.constant 2 : index
    %c0_6 = arith.constant 0 : index
    %16 = vector.load %arg1[%c2, %c0_6] : memref<4x128xf32, #tpu.memory_space<vmem>>, vector<1x128xf32>
    %17 = vector.broadcast %15 : vector<8x1xf32> to vector<8x128xf32>
    %18 = vector.broadcast %16 : vector<1x128xf32> to vector<8x128xf32>
    %19 = arith.mulf %17, %18 : vector<8x128xf32>
    %20 = arith.addf %14, %19 : vector<8x128xf32>
    %21 = vector.extract_strided_slice %0 {offsets = [0, 3], sizes = [8, 1], strides = [1, 1]} : vector<8x4xf32> to vector<8x1xf32>
    %c3 = arith.constant 3 : index
    %c0_7 = arith.constant 0 : index
    %22 = vector.load %arg1[%c3, %c0_7] : memref<4x128xf32, #tpu.memory_space<vmem>>, vector<1x128xf32>
    %23 = vector.broadcast %21 : vector<8x1xf32> to vector<8x128xf32>
    %24 = vector.broadcast %22 : vector<1x128xf32> to vector<8x128xf32>
    %25 = arith.mulf %23, %24 : vector<8x128xf32>
    %26 = arith.addf %20, %25 : vector<8x128xf32>
    %cst = arith.constant 0.000000e+00 : f32
    %27 = vector.broadcast %cst : f32 to vector<8x128xf32>
    %28 = arith.maximumf %26, %27 : vector<8x128xf32>
    %29 = arith.truncf %28 : vector<8x128xf32> to vector<8x128xbf16>
    %c0_8 = arith.constant 0 : index
    %c0_9 = arith.constant 0 : index
    %30 = vector.load %arg3[%c0_8, %c0_9] : memref<128x2xbf16, #tpu.memory_space<vmem>>, vector<128x2xbf16>
    %cst_10 = arith.constant dense<0.000000e+00> : vector<8x2xf32>
    %31 = tpu.matmul %29, %30, %cst_10 {dimension_numbers = #tpu.dot_dimension_numbers<[1], [0], [0], [1], [0, 0, 1, 1], [], []>} : vector<8x128xbf16>, vector<128x2xbf16>, vector<8x2xf32> -> vector<8x2xf32>
    %c0_11 = arith.constant 0 : index
    %c0_12 = arith.constant 0 : index
    %32 = vector.load %arg4[%c0_11, %c0_12] : memref<1x2xf32, #tpu.memory_space<vmem>>, vector<1x2xf32>
    %33 = vector.broadcast %32 : vector<1x2xf32> to vector<8x2xf32>
    %34 = arith.addf %31, %33 : vector<8x2xf32>
    %c0_13 = arith.constant 0 : index
    %c0_14 = arith.constant 0 : index
    %35 = vector.load %arg5[%c0_13, %c0_14] : memref<8x2xf32, #tpu.memory_space<vmem>>, vector<8x2xf32>
    tpu.vector_store %arg5[%c0_13, %c0_14], %34 {strides = array<i32>} : memref<8x2xf32, #tpu.memory_space<vmem>>, vector<8x2xf32>,
    return
  }
}

</mosaic_0001>

<llo_original>
// kernel: tpu_custom_call.1
$region0: #{tpu_custom_call.1}
  #allocation0 [shape = 'u32[]', space=smem, size = 0x4, offset = 0x4, fixed_abs, tag = 'smem constant byte address 0x4 - core index']
  #allocation1 [shape = 'u32[72,128]{1,0:T(1,128)}', space=vmem, size = 0x9000, scoped, tag = 'internal scratch']
  %s0 = inlined_call_operand.vmem [shape: f32[8,4], index: 0, kind: input, shape index: {}]
  %s1 = inlined_call_operand.vmem [shape: f32[4,128], index: 1, kind: input, shape index: {}]
  %s2 = inlined_call_operand.vmem [shape: f32[1,128], index: 2, kind: input, shape index: {}]
  %s3 = inlined_call_operand.vmem [shape: bf16[128,2], index: 3, kind: input, shape index: {}]
  %s4 = inlined_call_operand.vmem [shape: f32[1,2], index: 4, kind: input, shape index: {}]
  %s5 = inlined_call_operand.vmem [shape: f32[8,2], index: 5, kind: output, shape index: {}]
  %s6 = sld [smem:[#allocation0]]
  $region30: #{tpu_custom_call.1} parent=0
    _
  %s8 = ssub.s32 1, %s6
  %s9 = scalar_select 0, %s8, %s6
  // Predicated region
  $region2: #{tpu_custom_call.1} parent=0 // pred_check
    _
  $region3: #{tpu_custom_call.1} parent=0 // pred_check_branch
    %11 = sbr.rel (0) target = $region5
  $region4: #{tpu_custom_call.1} parent=0 // pred_region
    _
  $region5: #{tpu_custom_call.1} parent=0 // pred_fallthru
    _
  // Predicated region
  $region6: #{tpu_custom_call.1} parent=0 // pred_check
    _
  $region7: #{tpu_custom_call.1} parent=0 // pred_check_branch
    %13 = sbr.rel (0) target = $region9
  $region8: #{tpu_custom_call.1} parent=0 // pred_region
    _
  $region9: #{tpu_custom_call.1} parent=0 // pred_fallthru
    _
  // Predicated region
  $region10: #{tpu_custom_call.1} parent=0 // pred_check
    _
  $region11: #{tpu_custom_call.1} parent=0 // pred_check_branch
    %15 = sbr.rel (0) target = $region13
  $region12: #{tpu_custom_call.1} parent=0 // pred_region
    _
  $region13: #{tpu_custom_call.1} parent=0 // pred_fallthru
    _
  // Predicated region
  $region14: #{tpu_custom_call.1} parent=0 // pred_check
    _
  $region15: #{tpu_custom_call.1} parent=0 // pred_check_branch
    %17 = sbr.rel (0) target = $region17
  $region16: #{tpu_custom_call.1} parent=0 // pred_region
    _
  $region17: #{tpu_custom_call.1} parent=0 // pred_fallthru
    _
  // Predicated region
  $region18: #{tpu_custom_call.1} parent=0 // pred_check
    _
  $region19: #{tpu_custom_call.1} parent=0 // pred_check_branch
    %19 = sbr.rel (0) target = $region21
  $region20: #{tpu_custom_call.1} parent=0 // pred_region
    _
  $region21: #{tpu_custom_call.1} parent=0 // pred_fallthru
    _
  %v20 = vld [vmem:[%s0] sm:$0xff]
  %v21 = vld [vmem:[%s1] sm:$0x1]
  %23 = vset.pattern.permute.xlu0 0
  %24 = vperm.xlu0 %23, %v20
  %v25 = vpop.permute.xlu0 %24
  %v27 = vperm.slane %v21, 0
  %v28 = vmul.f32 %v25, %v27
  %v29 = vld [vmem:[%s2] sm:$0x1]
  %v31 = vperm.slane %v29, 0
  %v33 = vadd.f32 %v28, %v31
  %v34 = vld [vmem:[%s1 + $0x1] sm:$0x1]
  %35 = vset.pattern.permute.xlu0 1
  %36 = vperm.xlu0 %35, %v20
  %v37 = vpop.permute.xlu0 %36
  %v39 = vperm.slane %v34, 0
  %v40 = vmul.f32 %v37, %v39
  %v41 = vadd.f32 %v33, %v40
  %v42 = vld [vmem:[%s1 + $0x2] sm:$0x1]
  %43 = vset.pattern.permute.xlu0 2
  %44 = vperm.xlu0 %43, %v20
  %v45 = vpop.permute.xlu0 %44
  %v47 = vperm.slane %v42, 0
  %v48 = vmul.f32 %v45, %v47
  %v49 = vadd.f32 %v41, %v48
  %v50 = vld [vmem:[%s1 + $0x3] sm:$0x1]
  %51 = vset.pattern.permute.xlu0 3
  %52 = vperm.xlu0 %51, %v20
  %v53 = vpop.permute.xlu0 %52
  %v55 = vperm.slane %v50, 0
  %v56 = vmul.f32 %v53, %v55
  %v57 = vadd.f32 %v49, %v56
  %v58 = vmax.f32 %v57, 0.0
  %v59 = vpack.c.bf16 %v58, %v58
  %v60 = vld [vmem:[%s3] sm:$0xf]
  %v61 = vld [vmem:[%s3 + $0x4] sm:$0xf]
  %v62 = vld [vmem:[%s3 + $0x8] sm:$0xf]
  %v63 = vld [vmem:[%s3 + $0xc] sm:$0xf]
  %v64 = vld [vmem:[%s3 + $0x10] sm:$0xf]
  %v65 = vld [vmem:[%s3 + $0x14] sm:$0xf]
  %v66 = vld [vmem:[%s3 + $0x18] sm:$0xf]
  %v67 = vld [vmem:[%s3 + $0x1c] sm:$0xf]
  %v68 = vld [vmem:[%s3 + $0x20] sm:$0xf]
  %v69 = vld [vmem:[%s3 + $0x24] sm:$0xf]
  %v70 = vld [vmem:[%s3 + $0x28] sm:$0xf]
  %v71 = vld [vmem:[%s3 + $0x2c] sm:$0xf]
  %v72 = vld [vmem:[%s3 + $0x30] sm:$0xf]
  %v73 = vld [vmem:[%s3 + $0x34] sm:$0xf]
  %v74 = vld [vmem:[%s3 + $0x38] sm:$0xf]
  %v75 = vld [vmem:[%s3 + $0x3c] sm:$0xf]
  %v76 = vld [vmem:[%s4] sm:$0x1]
  %v78 = vperm.slane %v76, 0
  %v96 = vunpack.c.l.b16 %v60
  %v97 = vunpack.c.l.b16 %v61
  %v98 = vunpack.c.l.b16 %v62
  %v99 = vunpack.c.l.b16 %v63
  %v100 = vunpack.c.l.b16 %v64
  %v101 = vunpack.c.l.b16 %v65
  %v102 = vunpack.c.l.b16 %v66
  %v103 = vunpack.c.l.b16 %v67
  %v104 = vunpack.c.l.b16 %v68
  %v105 = vunpack.c.l.b16 %v69
  %v106 = vunpack.c.l.b16 %v70
  %v107 = vunpack.c.l.b16 %v71
  %v108 = vunpack.c.l.b16 %v72
  %v109 = vunpack.c.l.b16 %v73
  %v110 = vunpack.c.l.b16 %v74
  %v111 = vunpack.c.l.b16 %v75
  %v112 = vpack.c.b16 %v97, %v96
  %v113 = vpack.c.b16 %v99, %v98
  %v114 = vpack.c.b16 %v101, %v100
  %v115 = vpack.c.b16 %v103, %v102
  %v116 = vpack.c.b16 %v105, %v104
  %v117 = vpack.c.b16 %v107, %v106
  %v118 = vpack.c.b16 %v109, %v108
  %v119 = vpack.c.b16 %v111, %v110
  %128 = vmatpush.bf16.msra.mxu0 %v119
  %129 = vmatpush.bf16.msra.mxu0 %v118
  %130 = vmatpush.bf16.msra.mxu0 %v117
  %131 = vmatpush.bf16.msra.mxu0 %v116
  %132 = vmatpush.bf16.msra.mxu0 %v115
  %133 = vmatpush.bf16.msra.mxu0 %v114
  %134 = vmatpush.bf16.msra.mxu0 %v113
  %135 = vmatpush.bf16.msra.mxu0 %v112
  %136 = vmatmul.bf16.gmra.mxu0 %v59
  %v137 = vpop.f32.mrf.mxu0
  %v138 = vadd.f32 %v78, %v137
  %v139 = vpop.f32.mrf.mxu0
  %140 = vdwg.mxu0
  %vm141 = vcmask 15360
  %142 = vst.msk [vmem:[%s5] sm:$0xff] %vm141, %v138
  // Predicated region
  $region22: #{tpu_custom_call.1} parent=0 // pred_check
    _
  $region23: #{tpu_custom_call.1} parent=0 // pred_check_branch
    %144 = sbr.rel (0) target = $region25
  $region24: #{tpu_custom_call.1} parent=0 // pred_region
    _
  $region25: #{tpu_custom_call.1} parent=0 // pred_fallthru
    _
  // Predicated region
  $region26: #{tpu_custom_call.1} parent=0 // pred_check
    _
  $region27: #{tpu_custom_call.1} parent=0 // pred_check_branch
    %146 = sbr.rel (0) target = $region29
  $region28: #{tpu_custom_call.1} parent=0 // pred_region
    _
  $region29: #{tpu_custom_call.1} parent=0 // pred_fallthru
    _

</llo_original>
